<compile_context>
chip_gen: v6e
topology: v6e:2x2x1
jax: 0.10.0
libtpu: 0.0.40
codegen_flags: <defaults>
</compile_context>

<pallas_src>
import jax
import jax.numpy as jnp
from jax.experimental import pallas as pl
from jax.experimental.pallas import tpu as pltpu

H_LANES = 128   # lane-dense padding of the (fused) 10-wide hidden dim
OUT_COLS = 3    # final logits written narrow (full last dim of the output)


def _round_up(a, m):
    return (a + m - 1) // m * m


def _tpu_vmem_capacity_bytes():
    """Physical VMEM per core; v7x-safe fallback if the query is unavailable."""
    try:
        info = pltpu.get_tpu_info()
        return int(getattr(info, "vmem_capacity_bytes", 64 * 1024 * 1024))
    except Exception:
        return 64 * 1024 * 1024


def _choose_tile_b(B, F, x_itemsize, tile_budget_bytes):
    """Pick the batch tile from a VMEM budget (weights resident, x/out 2-buffered)."""
    resident = F * H_LANES * 4 + H_LANES * 4 + H_LANES * OUT_COLS * 4 + OUT_COLS * 4
    per_row = 2 * F * x_itemsize + 2 * OUT_COLS * 4
    tb = (tile_budget_bytes - resident) // max(per_row, 1)
    tb = max(8, min(int(tb), 2048))            # amortize ~0.35us/grid-step overhead
    tb = min(tb, _round_up(B, 8))              # never bigger than the (8-rounded) batch
    tb = max(8, (tb // 8) * 8)                 # sublane-aligned
    # v7x megacore: guarantee >= 2 grid steps so "parallel" shards across both TCs.
    if B >= 16 and pl.cdiv(B, tb) < 2:
        tb = max(8, _round_up(_round_up(B, 8) // 2, 8))
    return tb


def ensemble_kernel(x_ref, w1_ref, b1_ref, w2_ref, b2_ref, out_ref):
    # x_ref: (TB, F)          w1_ref: (F, 128)    b1_ref: (1, 128)
    # w2_ref: (128, 3)        b2_ref: (1, 3)      out_ref: (TB, 3)
    x = x_ref[...]

    # Fused (ensemble concat -> hidden) stage: h = ReLU(x @ (wm@wh) + (bm@wh+bh)).
    # Columns 10..127 of w1/b1 are zero-padded, so h[:, 10:] == 0 exactly.
    h = jnp.dot(x, w1_ref[...], preferred_element_type=jnp.float32)
    h = jnp.maximum(h + b1_ref[...], 0.0)

    # output = Linear(10 -> 3); rows 10..127 of w2 are zero so padding is exact.
    o = jnp.dot(h, w2_ref[...], preferred_element_type=jnp.float32)
    out_ref[...] = (o + b2_ref[...]).astype(out_ref.dtype)


def ensemble_forward(x_nchw, params):
    """x_nchw: (B, 1, H, W) float32 or bfloat16.  Returns (B, 3) float32 logits."""
    B = x_nchw.shape[0]
    x_flat = x_nchw.reshape(B, -1)          # row-major flatten == torch order
    F = x_flat.shape[1]

    # --- Algebraic fusion of the first two linear layers (computed in f32) ---
    w1 = params["wm"] @ params["wh"]                        # (F, 10)
    b1 = params["bm"] @ params["wh"] + params["bh"]         # (1, 10)
    w1 = jnp.pad(w1, ((0, 0), (0, H_LANES - 10)))           # (F, 128)
    b1 = jnp.pad(b1, ((0, 0), (0, H_LANES - 10)))           # (1, 128)
    w2 = jnp.pad(params["wo"], ((0, H_LANES - 10), (0, 0)))  # (128, 3)
    b2 = params["bo"]                                        # (1, 3)

    if x_flat.dtype == jnp.bfloat16:
        # Keep the bf16 MXU path for the big matmul; fused weight was built in f32.
        w1 = w1.astype(jnp.bfloat16)

    vmem_cap = _tpu_vmem_capacity_bytes()
    tile_budget = vmem_cap // 4                         # ample pipeline headroom
    vmem_limit = min(vmem_cap // 2, 64 * 1024 * 1024)   # 64 MiB on v5e/v6e, 32 MiB on v7x

    TB = _choose_tile_b(B, F, x_flat.dtype.itemsize, tile_budget)
    grid = (pl.cdiv(B, TB),)

    weight_bytes = sum(int(a.size) * a.dtype.itemsize for a in (w1, b1, w2, b2))
    cost = pl.CostEstimate(
        flops=2 * B * (F * H_LANES + H_LANES * OUT_COLS),
        transcendentals=0,
        bytes_accessed=int(x_flat.size) * x_flat.dtype.itemsize
        + weight_bytes
        + B * OUT_COLS * 4,
    )

    out = pl.pallas_call(
        ensemble_kernel,
        out_shape=jax.ShapeDtypeStruct((B, OUT_COLS), jnp.float32),
        grid_spec=pltpu.PrefetchScalarGridSpec(
            num_scalar_prefetch=0,
            grid=grid,
            in_specs=[
                pl.BlockSpec((TB, F), lambda i: (i, 0)),            # x tile
                pl.BlockSpec((F, H_LANES), lambda i: (0, 0)),       # fused w1 (resident)
                pl.BlockSpec((1, H_LANES), lambda i: (0, 0)),       # fused b1
                pl.BlockSpec((H_LANES, OUT_COLS), lambda i: (0, 0)),  # w2
                pl.BlockSpec((1, OUT_COLS), lambda i: (0, 0)),      # b2
            ],
            out_specs=pl.BlockSpec((TB, OUT_COLS), lambda i: (i, 0)),
        ),
        compiler_params=pltpu.CompilerParams(
            dimension_semantics=("parallel",),   # batch grid shards across TCs
            vmem_limit_bytes=vmem_limit,
        ),
        cost_estimate=cost,
    )(x_flat, w1, b1, w2, b2)

    return out


def init_params(key, feat_dim):
    ks = jax.random.split(key, 6)
    scale = 0.05
    return {
        # 10 frozen sub-models stacked along the output dim: (F, 10*3), (1, 30)
        "wm": scale * jax.random.normal(ks[0], (feat_dim, 30), jnp.float32),
        "bm": scale * jax.random.normal(ks[1], (1, 30), jnp.float32),
        # self.hidden = nn.Linear(30, 10)
        "wh": scale * jax.random.normal(ks[2], (30, 10), jnp.float32),
        "bh": scale * jax.random.normal(ks[3], (1, 10), jnp.float32),
        # self.output = nn.Linear(10, 3)
        "wo": scale * jax.random.normal(ks[4], (10, 3), jnp.float32),
        "bo": scale * jax.random.normal(ks[5], (1, 3), jnp.float32),
    }


def reference_forward(x_nchw, params):
    B = x_nchw.shape[0]
    x = x_nchw.reshape(B, -1).astype(jnp.float32)
    ens = x @ params["wm"] + params["bm"]          # concat of 10 x (B, 3)
    h = jnp.maximum(ens @ params["wh"] + params["bh"], 0.0)
    return h @ params["wo"] + params["bo"]


if __name__ == "__main__":
    key = jax.random.PRNGKey(0)
    k_x, k_p = jax.random.split(key)

    B, C, H, W = 2, 1, 16, 16
    x = jax.random.normal(k_x, (B, C, H, W), jnp.float32)
    params = init_params(k_p, C * H * W)
    ref = reference_forward(x, params)

    # f32 path: matches the unfused reference (fusion + MXU accumulation are f32).
    out = jax.block_until_ready(ensemble_forward(x, params))
    assert out.shape == (B, 3)
    assert jnp.allclose(out, ref, atol=1e-4, rtol=1e-4)

    # Larger, non-divisible batch: exercises the >=2-step "parallel" grid
    # (v7x megacore) and the masked partial tail block (no wrapper-side pad).
    B2 = 20
    x2 = jax.random.normal(k_x, (B2, C, H, W), jnp.float32)
    ref2 = reference_forward(x2, params)
    out2 = jax.block_until_ready(ensemble_forward(x2, params))
    assert out2.shape == (B2, 3)
    assert jnp.allclose(out2, ref2, atol=1e-4, rtol=1e-4)

    # bf16-producer path: no wrapper-side cast; kernel reads bf16 x directly
    # (halved dominant HBM read traffic) and accumulates in f32.
    out_bf16 = jax.block_until_ready(ensemble_forward(x.astype(jnp.bfloat16), params))
    assert out_bf16.shape == (B, 3)
    assert jnp.allclose(out_bf16, ref, atol=2e-2, rtol=2e-2)

    print("KERNEL_OK")
</pallas_src>

<mosaic_0001>
module attributes {stable_mosaic.version = 11 : i64} {
  func.func @ensemble_kernel(%arg0: i32, %arg1: memref<8x256xf32, #tpu.memory_space<vmem>>, %arg2: memref<256x128xf32, #tpu.memory_space<vmem>>, %arg3: memref<1x128xf32, #tpu.memory_space<vmem>>, %arg4: memref<128x3xf32, #tpu.memory_space<vmem>>, %arg5: memref<1x3xf32, #tpu.memory_space<vmem>>, %arg6: memref<8x3xf32, #tpu.memory_space<vmem>>) attributes {dimension_semantics = [#tpu.dimension_semantics<parallel>], iteration_bounds = array<i64: 1>, scalar_prefetch = 0 : i64, scratch_operands = 0 : i64, tpu.core_type = #tpu.core_type<tc>, window_params = [{transform_indices = @transform_0, window_bounds = array<i64: 8, 256>}, {pipeline_mode = #tpu.pipeline_mode<synchronous>, transform_indices = @transform_1, window_bounds = array<i64: 256, 128>}, {pipeline_mode = #tpu.pipeline_mode<synchronous>, transform_indices = @transform_2, window_bounds = array<i64: 1, 128>}, {pipeline_mode = #tpu.pipeline_mode<synchronous>, transform_indices = @transform_3, window_bounds = array<i64: 128, 3>}, {pipeline_mode = #tpu.pipeline_mode<synchronous>, transform_indices = @transform_4, window_bounds = array<i64: 1, 3>}, {transform_indices = @transform_5, window_bounds = array<i64: 8, 3>}]} {
    %c0 = arith.constant 0 : index
    %c0_0 = arith.constant 0 : index
    %0 = vector.load %arg1[%c0, %c0_0] : memref<8x256xf32, #tpu.memory_space<vmem>>, vector<8x256xf32>
    %c0_1 = arith.constant 0 : index
    %c0_2 = arith.constant 0 : index
    %1 = vector.load %arg2[%c0_1, %c0_2] : memref<256x128xf32, #tpu.memory_space<vmem>>, vector<256x128xf32>
    %cst = arith.constant dense<0.000000e+00> : vector<8x128xf32>
    %2 = tpu.matmul %0, %1, %cst {dimension_numbers = #tpu.dot_dimension_numbers<[1], [0], [0], [1], [0, 0, 1, 1], [], []>} : vector<8x256xf32>, vector<256x128xf32>, vector<8x128xf32> -> vector<8x128xf32>
    %c0_3 = arith.constant 0 : index
    %c0_4 = arith.constant 0 : index
    %3 = vector.load %arg3[%c0_3, %c0_4] : memref<1x128xf32, #tpu.memory_space<vmem>>, vector<1x128xf32>
    %4 = vector.broadcast %3 : vector<1x128xf32> to vector<8x128xf32>
    %5 = arith.addf %2, %4 : vector<8x128xf32>
    %cst_5 = arith.constant 0.000000e+00 : f32
    %6 = vector.broadcast %cst_5 : f32 to vector<8x128xf32>
    %7 = arith.maximumf %5, %6 : vector<8x128xf32>
    %c0_6 = arith.constant 0 : index
    %c0_7 = arith.constant 0 : index
    %8 = vector.load %arg4[%c0_6, %c0_7] : memref<128x3xf32, #tpu.memory_space<vmem>>, vector<128x3xf32>
    %cst_8 = arith.constant dense<0.000000e+00> : vector<8x3xf32>
    %9 = tpu.matmul %7, %8, %cst_8 {dimension_numbers = #tpu.dot_dimension_numbers<[1], [0], [0], [1], [0, 0, 1, 1], [], []>} : vector<8x128xf32>, vector<128x3xf32>, vector<8x3xf32> -> vector<8x3xf32>
    %c0_9 = arith.constant 0 : index
    %c0_10 = arith.constant 0 : index
    %10 = vector.load %arg5[%c0_9, %c0_10] : memref<1x3xf32, #tpu.memory_space<vmem>>, vector<1x3xf32>
    %11 = vector.broadcast %10 : vector<1x3xf32> to vector<8x3xf32>
    %12 = arith.addf %9, %11 : vector<8x3xf32>
    %c0_11 = arith.constant 0 : index
    %c0_12 = arith.constant 0 : index
    %13 = vector.load %arg6[%c0_11, %c0_12] : memref<8x3xf32, #tpu.memory_space<vmem>>, vector<8x3xf32>
    tpu.vector_store %arg6[%c0_11, %c0_12], %12 {strides = array<i32>} : memref<8x3xf32, #tpu.memory_space<vmem>>, vector<8x3xf32>,
    return
  }
  func.func @transform_0(%arg0: i32) -> (i32, i32) {
    %c0_i32 = arith.constant 0 : i32
    %c0_i32_0 = arith.constant 0 : i32
    return %arg0, %c0_i32 : i32, i32
  }
  func.func @transform_1(%arg0: i32) -> (i32, i32) {
    %c0_i32 = arith.constant 0 : i32
    %c0_i32_0 = arith.constant 0 : i32
    %c0_i32_1 = arith.constant 0 : i32
    return %c0_i32, %c0_i32_0 : i32, i32
  }
  func.func @transform_2(%arg0: i32) -> (i32, i32) {
    %c0_i32 = arith.constant 0 : i32
    %c0_i32_0 = arith.constant 0 : i32
    %c0_i32_1 = arith.constant 0 : i32
    return %c0_i32, %c0_i32_0 : i32, i32
  }
  func.func @transform_3(%arg0: i32) -> (i32, i32) {
    %c0_i32 = arith.constant 0 : i32
    %c0_i32_0 = arith.constant 0 : i32
    %c0_i32_1 = arith.constant 0 : i32
    return %c0_i32, %c0_i32_0 : i32, i32
  }
  func.func @transform_4(%arg0: i32) -> (i32, i32) {
    %c0_i32 = arith.constant 0 : i32
    %c0_i32_0 = arith.constant 0 : i32
    %c0_i32_1 = arith.constant 0 : i32
    return %c0_i32, %c0_i32_0 : i32, i32
  }
  func.func @transform_5(%arg0: i32) -> (i32, i32) {
    %c0_i32 = arith.constant 0 : i32
    %c0_i32_0 = arith.constant 0 : i32
    return %arg0, %c0_i32 : i32, i32
  }
}

</mosaic_0001>

<llo_original>
// kernel: tpu_custom_call.1
$region0: #{tpu_custom_call.1}
  #allocation0 [shape = 'u32[]', space=smem, size = 0x4, offset = 0x4, fixed_abs, tag = 'smem constant byte address 0x4 - core index']
  #allocation1 [shape = 'u32[144,128]{1,0:T(1,128)}', space=vmem, size = 0x12000, scoped, tag = 'internal scratch']
  %s0 = inlined_call_operand.vmem [shape: f32[2,256], index: 0, kind: input, shape index: {}]
  %s1 = inlined_call_operand.hbm [shape: f32[256,128], index: 1, kind: input, shape index: {}]
  %s2 = inlined_call_operand.vmem [shape: f32[1,128], index: 2, kind: input, shape index: {}]
  %s3 = inlined_call_operand.vmem [shape: f32[128,3], index: 3, kind: input, shape index: {}]
  %s4 = inlined_call_operand.vmem [shape: f32[1,3], index: 4, kind: input, shape index: {}]
  %s5 = inlined_call_operand.hbm [shape: f32[2,3], index: 5, kind: output, shape index: {}]
  %s6 = sld [smem:[#allocation0]]
  $region34: #{tpu_custom_call.1} parent=0
    _
  %s8 = ssub.s32 1, %s6
  %s9 = scalar_select 0, %s8, %s6
  $region1: #{tpu_custom_call.1} parent=0
    #allocation2 [shape = 'u8[131072]{0}', space=vmem, size = 0x20000, scoped, tag = 'input window, operand 1, single buffered']
    #allocation3 [shape = 's32[1]{0}', space=sflag, size = 0x4, scoped, tag = 'scoped memory for tpu_custom_call.1']
    #allocation4 [shape = 's32[1]{0}', space=sflag, size = 0x4, scoped, tag = 'scoped memory for tpu_custom_call.1']
    #allocation5 [shape = 'u8[4096]{0}', space=vmem, size = 0x1000, scoped, tag = 'output window, operand 0, single buffered']
    %10 = vsyncpa [#allocation3], 0
    %11 = vsyncpa [#allocation4], 0
    // Predicated region
    $region2: #{tpu_custom_call.1} parent=1 // pred_check
      _
    $region3: #{tpu_custom_call.1} parent=1 // pred_check_branch
      %13 = sbr.rel (0) target = $region5
    $region4: #{tpu_custom_call.1} parent=1 // pred_region
      _
    $region5: #{tpu_custom_call.1} parent=1 // pred_fallthru
      _
    // Predicated region
    $region6: #{tpu_custom_call.1} parent=1 // pred_check
      _
    $region7: #{tpu_custom_call.1} parent=1 // pred_check_branch
      %15 = sbr.rel (0) target = $region9
    $region8: #{tpu_custom_call.1} parent=1 // pred_region
      %s17 = ssub.s32 4096, 4096
      %18 = vsyncadd [#allocation3], %s17
      %s19 = sshll.u32 [#allocation2], 4
      %s20 = int_to_ptr.vmem [resolvable:$true] %s19
      %25 = dma.hbm_to_vmem [thread:$0]  %s1, 4096, %s20, [#allocation3], 128, 128, 8
    $region9: #{tpu_custom_call.1} parent=1 // pred_fallthru
      _
    // Predicated region
    $region10: #{tpu_custom_call.1} parent=1 // pred_check
      _
    $region11: #{tpu_custom_call.1} parent=1 // pred_check_branch
      %27 = sbr.rel (0) target = $region13
    $region12: #{tpu_custom_call.1} parent=1 // pred_region
      _
    $region13: #{tpu_custom_call.1} parent=1 // pred_fallthru
      _
    // Predicated region
    $region14: #{tpu_custom_call.1} parent=1 // pred_check
      _
    $region15: #{tpu_custom_call.1} parent=1 // pred_check_branch
      %29 = sbr.rel (0) target = $region17
    $region16: #{tpu_custom_call.1} parent=1 // pred_region
      _
    $region17: #{tpu_custom_call.1} parent=1 // pred_fallthru
      _
    // Predicated region
    $region18: #{tpu_custom_call.1} parent=1 // pred_check
      _
    $region19: #{tpu_custom_call.1} parent=1 // pred_check_branch
      %31 = sbr.rel (0) target = $region21
    $region20: #{tpu_custom_call.1} parent=1 // pred_region
      _
    $region21: #{tpu_custom_call.1} parent=1 // pred_fallthru
      _
    // Predicated region
    $region22: #{tpu_custom_call.1} parent=1 // pred_check
      _
    $region23: #{tpu_custom_call.1} parent=1 // pred_check_branch
      %33 = sbr.rel (0) target = $region25
    $region24: #{tpu_custom_call.1} parent=1 // pred_region
      %34 = dma.done [#allocation3], 4096
    $region25: #{tpu_custom_call.1} parent=1 // pred_fallthru
      _
    %v35 = vld [vmem:[%s0] sm:$0xf]
    %v36 = vld [vmem:[%s0 + $0x4] sm:$0xf]
    %v37 = vld [vmem:[%s0 + $0x8] sm:$0xf]
    %v38 = vld [vmem:[%s0 + $0xc] sm:$0xf]
    %v39 = vld [vmem:[#allocation2] sm:$0xff]
    %v40 = vld [vmem:[#allocation2 + $0x8] sm:$0xff]
    %v41 = vld [vmem:[#allocation2 + $0x10] sm:$0xff]
    %v42 = vld [vmem:[#allocation2 + $0x18] sm:$0xff]
    %v43 = vld [vmem:[#allocation2 + $0x20] sm:$0xff]
    %v44 = vld [vmem:[#allocation2 + $0x28] sm:$0xff]
    %v45 = vld [vmem:[#allocation2 + $0x30] sm:$0xff]
    %v46 = vld [vmem:[#allocation2 + $0x38] sm:$0xff]
    %v47 = vld [vmem:[#allocation2 + $0x40] sm:$0xff]
    %v48 = vld [vmem:[#allocation2 + $0x48] sm:$0xff]
    %v49 = vld [vmem:[#allocation2 + $0x50] sm:$0xff]
    %v50 = vld [vmem:[#allocation2 + $0x58] sm:$0xff]
    %v51 = vld [vmem:[#allocation2 + $0x60] sm:$0xff]
    %v52 = vld [vmem:[#allocation2 + $0x68] sm:$0xff]
    %v53 = vld [vmem:[#allocation2 + $0x70] sm:$0xff]
    %v54 = vld [vmem:[#allocation2 + $0x78] sm:$0xff]
    %v55 = vld [vmem:[#allocation2 + $0x80] sm:$0xff]
    %v56 = vld [vmem:[#allocation2 + $0x88] sm:$0xff]
    %v57 = vld [vmem:[#allocation2 + $0x90] sm:$0xff]
    %v58 = vld [vmem:[#allocation2 + $0x98] sm:$0xff]
    %v59 = vld [vmem:[#allocation2 + $0xa0] sm:$0xff]
    %v60 = vld [vmem:[#allocation2 + $0xa8] sm:$0xff]
    %v61 = vld [vmem:[#allocation2 + $0xb0] sm:$0xff]
    %v62 = vld [vmem:[#allocation2 + $0xb8] sm:$0xff]
    %v63 = vld [vmem:[#allocation2 + $0xc0] sm:$0xff]
    %v64 = vld [vmem:[#allocation2 + $0xc8] sm:$0xff]
    %v65 = vld [vmem:[#allocation2 + $0xd0] sm:$0xff]
    %v66 = vld [vmem:[#allocation2 + $0xd8] sm:$0xff]
    %v67 = vld [vmem:[#allocation2 + $0xe0] sm:$0xff]
    %v68 = vld [vmem:[#allocation2 + $0xe8] sm:$0xff]
    %v69 = vld [vmem:[#allocation2 + $0xf0] sm:$0xff]
    %v70 = vld [vmem:[#allocation2 + $0xf8] sm:$0xff]
    %v71 = vld [vmem:[%s2] sm:$0x1]
    %v73 = vlaneseq
    %v74 = vshrl.u32 %v73, 7
    %v75 = vsub.s32 0, %v74
    %v76 = vrot.slane %v71, %v75
    %v82 = vcombine.low %v35, %v36
    %v83 = vcombine.low %v37, %v38
    %v85 = vunpack.c.l.s4 1983009808
    %v86 = vunpack.c.0.s8 %v85
    %v87 = vlaneseq
    %v88 = vshrl.u32 %v87, 7
    %v89 = vsub.s32 %v86, %v88
    %v90 = vrot.slane %v82, %v89
    %v92 = vunpack.c.l.s4 1983009808
    %v93 = vunpack.c.0.s8 %v92
    %v94 = vlaneseq
    %v95 = vshrl.u32 %v94, 7
    %v96 = vsub.s32 %v93, %v95
    %v97 = vrot.slane %v83, %v96
    %v98 = vcombine.low %v90, %v97
    %v99 = vcombine.high %v90, %v97
    %102 = vmatprep.subr.mxu0 0.0
    %103 = vmatpush1.msra.mxu0 %v54
    %104 = vmatprep.subr.mxu0 0.0
    %105 = vmatpush1.msra.mxu0 %v53
    %106 = vmatprep.subr.mxu0 0.0
    %107 = vmatpush1.msra.mxu0 %v52
    %108 = vmatprep.subr.mxu0 0.0
    %109 = vmatpush1.msra.mxu0 %v51
    %110 = vmatprep.subr.mxu0 0.0
    %111 = vmatpush1.msra.mxu0 %v50
    %112 = vmatprep.subr.mxu0 0.0
    %113 = vmatpush1.msra.mxu0 %v49
    %114 = vmatprep.subr.mxu0 0.0
    %115 = vmatpush1.msra.mxu0 %v48
    %116 = vmatprep.subr.mxu0 0.0
    %117 = vmatpush1.msra.mxu0 %v47
    %118 = vmatprep.subr.mxu0 0.0
    %119 = vmatpush1.msra.mxu0 %v46
    %120 = vmatprep.subr.mxu0 0.0
    %121 = vmatpush1.msra.mxu0 %v45
    %122 = vmatprep.subr.mxu0 0.0
    %123 = vmatpush1.msra.mxu0 %v44
    %124 = vmatprep.subr.mxu0 0.0
    %125 = vmatpush1.msra.mxu0 %v43
    %126 = vmatprep.subr.mxu0 0.0
    %127 = vmatpush1.msra.mxu0 %v42
    %128 = vmatprep.subr.mxu0 0.0
    %129 = vmatpush1.msra.mxu0 %v41
    %130 = vmatprep.subr.mxu0 0.0
    %131 = vmatpush1.msra.mxu0 %v40
    %132 = vmatprep.subr.mxu0 0.0
    %133 = vmatpush1.msra.mxu0 %v39
    %134 = vmatprep.subr.mxu0 0.0
    %135 = vmatpush2.msra.mxu0 %v70
    %136 = vmatprep.subr.mxu0 0.0
    %137 = vmatpush2.msra.mxu0 %v69
    %138 = vmatprep.subr.mxu0 0.0
    %139 = vmatpush2.msra.mxu0 %v68
    %140 = vmatprep.subr.mxu0 0.0
    %141 = vmatpush2.msra.mxu0 %v67
    %142 = vmatprep.subr.mxu0 0.0
    %143 = vmatpush2.msra.mxu0 %v66
    %144 = vmatprep.subr.mxu0 0.0
    %145 = vmatpush2.msra.mxu0 %v65
    %146 = vmatprep.subr.mxu0 0.0
    %147 = vmatpush2.msra.mxu0 %v64
    %148 = vmatprep.subr.mxu0 0.0
    %149 = vmatpush2.msra.mxu0 %v63
    %150 = vmatprep.subr.mxu0 0.0
    %151 = vmatpush2.msra.mxu0 %v62
    %152 = vmatprep.subr.mxu0 0.0
    %153 = vmatpush2.msra.mxu0 %v61
    %154 = vmatprep.subr.mxu0 0.0
    %155 = vmatpush2.msra.mxu0 %v60
    %156 = vmatprep.subr.mxu0 0.0
    %157 = vmatpush2.msra.mxu0 %v59
    %158 = vmatprep.subr.mxu0 0.0
    %159 = vmatpush2.msra.mxu0 %v58
    %160 = vmatprep.subr.mxu0 0.0
    %161 = vmatpush2.msra.mxu0 %v57
    %162 = vmatprep.subr.mxu0 0.0
    %163 = vmatpush2.msra.mxu0 %v56
    %164 = vmatprep.subr.mxu0 0.0
    %165 = vmatpush2.msra.mxu0 %v55
    %166 = vmatprep.mubr.f32.mxu0 %v99
    %167 = vmatmul.mubr.f32.gmra.mxu0 %v98
    %v168 = vpop.f32.mrf.mxu0
    %v169 = vadd.f32 %v76, %v168
    %v170 = vpop.f32.mrf.mxu0
    %171 = vdwg.mxu0
    %v172 = vmax.f32 %v169, 0.0
    %v173 = vld [vmem:[%s3] sm:$0xff]
    %v174 = vld [vmem:[%s3 + $0x8] sm:$0xff]
    %v175 = vld [vmem:[%s3 + $0x10] sm:$0xff]
    %v176 = vld [vmem:[%s3 + $0x18] sm:$0xff]
    %v177 = vld [vmem:[%s3 + $0x20] sm:$0xff]
    %v178 = vld [vmem:[%s3 + $0x28] sm:$0xff]
    %v179 = vld [vmem:[%s3 + $0x30] sm:$0xff]
    %v180 = vld [vmem:[%s3 + $0x38] sm:$0xff]
    %v181 = vld [vmem:[%s3 + $0x40] sm:$0xff]
    %v182 = vld [vmem:[%s3 + $0x48] sm:$0xff]
    %v183 = vld [vmem:[%s3 + $0x50] sm:$0xff]
    %v184 = vld [vmem:[%s3 + $0x58] sm:$0xff]
    %v185 = vld [vmem:[%s3 + $0x60] sm:$0xff]
    %v186 = vld [vmem:[%s3 + $0x68] sm:$0xff]
    %v187 = vld [vmem:[%s3 + $0x70] sm:$0xff]
    %v188 = vld [vmem:[%s3 + $0x78] sm:$0xff]
    %v189 = vld [vmem:[%s4] sm:$0x1]
    %v191 = vlaneseq
    %v192 = vshrl.u32 %v191, 7
    %v193 = vsub.s32 0, %v192
    %v194 = vrot.slane %v189, %v193
    %196 = vmatprep.subr.mxu0 0.0
    %197 = vmatpush1.msra.mxu0 %v188
    %198 = vmatprep.subr.mxu0 0.0
    %199 = vmatpush1.msra.mxu0 %v187
    %200 = vmatprep.subr.mxu0 0.0
    %201 = vmatpush1.msra.mxu0 %v186
    %202 = vmatprep.subr.mxu0 0.0
    %203 = vmatpush1.msra.mxu0 %v185
    %204 = vmatprep.subr.mxu0 0.0
    %205 = vmatpush1.msra.mxu0 %v184
    %206 = vmatprep.subr.mxu0 0.0
    %207 = vmatpush1.msra.mxu0 %v183
    %208 = vmatprep.subr.mxu0 0.0
    %209 = vmatpush1.msra.mxu0 %v182
    %210 = vmatprep.subr.mxu0 0.0
    %211 = vmatpush1.msra.mxu0 %v181
    %212 = vmatprep.subr.mxu0 0.0
    %213 = vmatpush1.msra.mxu0 %v180
    %214 = vmatprep.subr.mxu0 0.0
    %215 = vmatpush1.msra.mxu0 %v179
    %216 = vmatprep.subr.mxu0 0.0
    %217 = vmatpush1.msra.mxu0 %v178
    %218 = vmatprep.subr.mxu0 0.0
    %219 = vmatpush1.msra.mxu0 %v177
    %220 = vmatprep.subr.mxu0 0.0
    %221 = vmatpush1.msra.mxu0 %v176
    %222 = vmatprep.subr.mxu0 0.0
    %223 = vmatpush1.msra.mxu0 %v175
    %224 = vmatprep.subr.mxu0 0.0
    %225 = vmatpush1.msra.mxu0 %v174
    %226 = vmatprep.subr.mxu0 0.0
    %227 = vmatpush1.msra.mxu0 %v173
    %228 = vmatprep.subr.mxu0 0.0
    %229 = vmatpush2.msra.mxu0 0.0
    %230 = vmatprep.subr.mxu0 0.0
    %231 = vmatpush2.msra.mxu0 0.0
    %232 = vmatprep.subr.mxu0 0.0
    %233 = vmatpush2.msra.mxu0 0.0
    %234 = vmatprep.subr.mxu0 0.0
    %235 = vmatpush2.msra.mxu0 0.0
    %236 = vmatprep.subr.mxu0 0.0
    %237 = vmatpush2.msra.mxu0 0.0
    %238 = vmatprep.subr.mxu0 0.0
    %239 = vmatpush2.msra.mxu0 0.0
    %240 = vmatprep.subr.mxu0 0.0
    %241 = vmatpush2.msra.mxu0 0.0
    %242 = vmatprep.subr.mxu0 0.0
    %243 = vmatpush2.msra.mxu0 0.0
    %244 = vmatprep.subr.mxu0 0.0
    %245 = vmatpush2.msra.mxu0 0.0
    %246 = vmatprep.subr.mxu0 0.0
    %247 = vmatpush2.msra.mxu0 0.0
    %248 = vmatprep.subr.mxu0 0.0
    %249 = vmatpush2.msra.mxu0 0.0
    %250 = vmatprep.subr.mxu0 0.0
    %251 = vmatpush2.msra.mxu0 0.0
    %252 = vmatprep.subr.mxu0 0.0
    %253 = vmatpush2.msra.mxu0 0.0
    %254 = vmatprep.subr.mxu0 0.0
    %255 = vmatpush2.msra.mxu0 0.0
    %256 = vmatprep.subr.mxu0 0.0
    %257 = vmatpush2.msra.mxu0 0.0
    %258 = vmatprep.subr.mxu0 0.0
    %259 = vmatpush2.msra.mxu0 0.0
    %260 = vmatprep.mubr.f32.mxu0 0.0
    %261 = vmatmul.mubr.f32.gmra.mxu0 %v172
    %v262 = vpop.f32.mrf.mxu0
    %v263 = vadd.f32 %v194, %v262
    %v264 = vpop.f32.mrf.mxu0
    %265 = vdwg.mxu0
    %vm266 = vcmask 23552
    %267 = vst.msk [vmem:[#allocation5] sm:$0xff] %vm266, %v263
    // Predicated region
    $region26: #{tpu_custom_call.1} parent=1 // pred_check
      _
    $region27: #{tpu_custom_call.1} parent=1 // pred_check_branch
      %269 = sbr.rel (0) target = $region29
    $region28: #{tpu_custom_call.1} parent=1 // pred_region
      %s271 = ssub.s32 128, 32
      %272 = vsyncadd [#allocation4], %s271
      %s273 = sshll.u32 [#allocation5], 4
      %s274 = int_to_ptr.vmem [resolvable:$true] %s273
      %279 = dma.vmem_to_hbm [thread:$0]  %s274, 32, %s5, [#allocation4], 32, 32, 2
    $region29: #{tpu_custom_call.1} parent=1 // pred_fallthru
      _
    // Predicated region
    $region30: #{tpu_custom_call.1} parent=1 // pred_check
      _
    $region31: #{tpu_custom_call.1} parent=1 // pred_check_branch
      %281 = sbr.rel (0) target = $region33
    $region32: #{tpu_custom_call.1} parent=1 // pred_region
      %282 = dma.done [#allocation4], 128
    $region33: #{tpu_custom_call.1} parent=1 // pred_fallthru
      _
    %283 = vsyncpa [#allocation3], 1
    %284 = vsyncpa [#allocation4], 1

</llo_original>
